<compile_context>
chip_gen: v5e
topology: v5e:2x2
jax: 0.10.0
libtpu: 0.0.40
codegen_flags: <defaults>
</compile_context>

<pallas_src>
import functools
import math

import jax
import jax.numpy as jnp
from jax import lax
from jax.experimental import pallas as pl
from jax.experimental.pallas import tpu as pltpu


def _attention_kernel(x_ref, wqkv_ref, wo_ref, rot_ref, elem_ref,
                      hmask_ref, amask_ref, o_ref, *,
                      n_heads: int, seq_len: int, eps: float, mm_dtype):
    """Single fused step over the whole (batch-folded) problem.

    x_ref    : (N, D)        flattened tokens, N = B*L
    wqkv_ref : (D, 3D)       fused q/k/v projection (already transposed)
    wo_ref   : (D, D)        output projection (already transposed)
    rot_ref  : (D, D)        exact +-1 rotate-half (pair swap with sign)
    elem_ref : (4, 2N, D)    [gamma, beta, cos, sin] for the stacked q||k block
                             (sm_scale pre-folded into the q rows' gamma/beta)
    hmask_ref: (B*H*L, D)    0/1 head-column selector for rows in (b,h,l) order
    amask_ref: (B*H*L, N)    additive mask: user (causal) mask on diagonal
                             batch blocks, -inf across batches
    o_ref    : (N, D)        output tokens
    """
    N, D = x_ref.shape
    L = seq_len
    B = N // L
    H = n_heads

    # ---- fused QKV projection (1 MXU push) ---------------------------------
    x = x_ref[...].astype(mm_dtype)
    qkv = jnp.dot(x, wqkv_ref[...], preferred_element_type=jnp.float32)  # (N,3D)
    q = qkv[:, 0:D]
    k = qkv[:, D:2 * D]
    v = qkv[:, 2 * D:3 * D]

    # ---- stacked q||k LayerNorm + RoPE (runs once on the (2N, D) block) ----
    qk = jnp.concatenate([q, k], axis=0)                     # (2N, D) f32
    gamma = elem_ref[0]
    beta = elem_ref[1]
    cos = elem_ref[2]
    sin = elem_ref[3]

    mu = jnp.mean(qk, axis=-1, keepdims=True)
    qc = qk - mu
    var = jnp.mean(qc * qc, axis=-1, keepdims=True)
    qk = qc * lax.rsqrt(var + eps) * gamma + beta

    # Interleaved RoPE: rotate-half expressed as an exact +-1 matmul (f32).
    qk = qk * cos + jnp.dot(qk, rot_ref[...],
                            preferred_element_type=jnp.float32) * sin

    q = qk[0:N, :]
    k = qk[N:2 * N, :]

    # ---- all-(batch, head) attention in ONE score/softmax/PV pass ----------
    # Replicate q rows into (b, h, l) order (cheap sublane concat) and keep
    # only head h's columns so a full-D contraction gives per-head scores.
    parts = []
    for b in range(B):
        qb = q[b * L:(b + 1) * L, :]
        for _ in range(H):
            parts.append(qb)
    q_exp = jnp.concatenate(parts, axis=0) * hmask_ref[...]   # (B*H*L, D)

    s = lax.dot_general(q_exp.astype(mm_dtype), k.astype(mm_dtype),
                        (((1,), (1,)), ((), ())),
                        preferred_element_type=jnp.float32)   # (B*H*L, N)
    s = s + amask_ref[...]

    m = jnp.max(s, axis=-1, keepdims=True)
    p = jnp.exp(s - m)
    denom = jnp.sum(p, axis=-1, keepdims=True)
    p = p * pl.reciprocal(denom, approx=True)                 # EUP slot

    ov = jnp.dot(p.astype(mm_dtype), v.astype(mm_dtype),
                 preferred_element_type=jnp.float32)          # (B*H*L, D)
    ov = ov * hmask_ref[...]        # keep only head h's columns per row group

    # Fold the H row groups back to (N, D): per batch, sum the head groups
    # (each contributes a disjoint set of columns) — sublane slices + adds.
    rows = []
    for b in range(B):
        acc_b = ov[b * H * L:b * H * L + L, :]
        for h in range(1, H):
            acc_b = acc_b + ov[b * H * L + h * L:b * H * L + (h + 1) * L, :]
        rows.append(acc_b)
    o_heads = jnp.concatenate(rows, axis=0)                   # (N, D)

    # ---- output projection (1 MXU push) ------------------------------------
    out = jnp.dot(o_heads.astype(mm_dtype), wo_ref[...],
                  preferred_element_type=jnp.float32)
    # TODO(synk): D=32 (<128 lanes) forces a masked partial store; inherent to
    # the module's hidden size (a lane-dense slab needs D to be a mult of 128).
    o_ref[...] = out.astype(o_ref.dtype)


def attention_forward(x, attn_mask, freqs_cos, freqs_sin, params, n_heads,
                      eps=1e-5, mm_dtype=jnp.bfloat16):
    """Pallas implementation of Attention.forward.

    x        : (B, L, D) float32
    attn_mask: additive float mask, shape (L, L) or (1, 1, L, L)
    freqs_cos/freqs_sin: (>=L, D//2)  (real/imag of freq_cis)
    params   : PyTorch-layout weights: wq/wk/wv/wo (D_out, D_in),
               q_gamma/q_beta/k_gamma/k_beta (D,)
    mm_dtype : dtype fed to the MXU (bf16 default; use jnp.float32 for exact).
    """
    B, L, D = x.shape
    H = n_heads
    hd = D // H
    N = B * L
    sm_scale = 1.0 / math.sqrt(hd)
    f32 = jnp.float32

    # ---- one-time parameter prep (no per-token HBM work) -------------------
    wqkv_t = jnp.concatenate(
        [params["wq"].T, params["wk"].T, params["wv"].T], axis=1
    ).astype(mm_dtype)                                        # (D, 3D)
    wo_t = params["wo"].T.astype(mm_dtype)                    # (D, D)

    # LayerNorm gamma/beta for the stacked q||k block; sm_scale folded into q
    # (RoPE and the score matmul are linear in q, so the scale commutes).
    qg = (params["q_gamma"] * sm_scale).astype(f32)
    qb = (params["q_beta"] * sm_scale).astype(f32)
    kg = params["k_gamma"].astype(f32)
    kb = params["k_beta"].astype(f32)
    gamma_s = jnp.concatenate([jnp.broadcast_to(qg, (N, D)),
                               jnp.broadcast_to(kg, (N, D))], axis=0)
    beta_s = jnp.concatenate([jnp.broadcast_to(qb, (N, D)),
                              jnp.broadcast_to(kb, (N, D))], axis=0)

    # RoPE tables: (L, D/2) -> interleaved (L, D), tiled over batch and q||k.
    cos_full = jnp.repeat(freqs_cos[:L].astype(f32), 2, axis=-1)   # (L, D)
    sin_full = jnp.repeat(freqs_sin[:L].astype(f32), 2, axis=-1)
    cos_s = jnp.tile(cos_full, (2 * B, 1))                    # (2N, D)
    sin_s = jnp.tile(sin_full, (2 * B, 1))

    # Single elementwise-table operand: [gamma, beta, cos, sin].
    elem_tab = jnp.stack([gamma_s, beta_s, cos_s, sin_s], axis=0)   # (4,2N,D)

    # Exact +-1 rotate-half matrix (kept f32): (t @ rot)[:,2i]   = -t[:,2i+1]
    #                                           (t @ rot)[:,2i+1] =  t[:,2i]
    idx = jnp.arange(D // 2)
    rot = jnp.zeros((D, D), f32)
    rot = rot.at[2 * idx + 1, 2 * idx].set(-1.0)
    rot = rot.at[2 * idx, 2 * idx + 1].set(1.0)

    # Head-column selection mask for rows in (b, h, l) order.
    col_head = jnp.arange(D) // hd                            # (D,)
    row_head = jnp.tile(jnp.repeat(jnp.arange(H), L), B)      # (B*H*L,)
    head_mask = (row_head[:, None] == col_head[None, :]).astype(f32)

    # Additive attention mask expanded to (B*H*L, B*L): user's (causal) mask
    # on the diagonal batch blocks, -inf across batches.
    # TODO(synk): if a mask with fully-masked rows is ever passed, add a safe
    # denominator guard (the causal diagonal prevents a 0-sum softmax here).
    mask2d = attn_mask.astype(f32).reshape(L, L)
    same_b = jnp.eye(B, dtype=bool)
    m_blj = jnp.where(same_b[:, None, :, None], mask2d[None, :, None, :],
                      -jnp.inf)                               # (B, L, B, L)
    mask_big = jnp.broadcast_to(m_blj.reshape(B, L, N)[:, None],
                                (B, H, L, N)).reshape(B * H * L, N)

    x_flat = x.reshape(N, D)     # free view; folds the batch into one call

    kernel = functools.partial(_attention_kernel, n_heads=H, seq_len=L,
                               eps=float(eps), mm_dtype=mm_dtype)
    z2 = lambda i: (0, 0)
    z3 = lambda i: (0, 0, 0)

    out_flat = pl.pallas_call(
        kernel,
        out_shape=jax.ShapeDtypeStruct((N, D), x.dtype),
        grid_spec=pltpu.PrefetchScalarGridSpec(
            num_scalar_prefetch=0,
            # Single fused invocation (batch folded).  For large B (>=8) a
            # leading "parallel" batch grid axis can shard across v7x's 2 TCs.
            grid=(1,),
            in_specs=[
                pl.BlockSpec((N, D), z2),             # x (flattened batch)
                pl.BlockSpec((D, 3 * D), z2),         # fused wqkv^T
                pl.BlockSpec((D, D), z2),             # wo^T
                pl.BlockSpec((D, D), z2),             # rotate-half matrix
                pl.BlockSpec((4, 2 * N, D), z3),      # gamma/beta/cos/sin
                pl.BlockSpec((B * H * L, D), z2),     # head-column mask
                pl.BlockSpec((B * H * L, N), z2),     # additive attn mask
            ],
            out_specs=pl.BlockSpec((N, D), z2),
        ),
        compiler_params=pltpu.CompilerParams(
            dimension_semantics=("arbitrary",),
            vmem_limit_bytes=32 * 1024 * 1024),       # safe on v5e/v6e/v7x
    )(x_flat, wqkv_t, wo_t, rot, elem_tab, head_mask, mask_big)

    return out_flat.reshape(B, L, D)


def _attention_reference(x, attn_mask, freqs_cos, freqs_sin, params,
                         n_heads, eps=1e-5):
    """Pure-JAX reference replicating the PyTorch forward."""
    B, L, D = x.shape
    hd = D // n_heads

    q = x @ params["wq"].T
    k = x @ params["wk"].T
    v = x @ params["wv"].T

    def ln(y, g, b):
        mu = jnp.mean(y, axis=-1, keepdims=True)
        var = jnp.mean((y - mu) ** 2, axis=-1, keepdims=True)
        return (y - mu) / jnp.sqrt(var + eps) * g + b

    q = ln(q, params["q_gamma"], params["q_beta"])
    k = ln(k, params["k_gamma"], params["k_beta"])

    def rope(t):
        tr = t.reshape(B, L, D // 2, 2)
        re, im = tr[..., 0], tr[..., 1]
        c = freqs_cos[:L][None]
        s = freqs_sin[:L][None]
        o_re = re * c - im * s
        o_im = re * s + im * c
        return jnp.stack([o_re, o_im], axis=-1).reshape(B, L, D)

    q = rope(q)
    k = rope(k)

    qh = q.reshape(B, L, n_heads, hd).transpose(0, 2, 1, 3)
    kh = k.reshape(B, L, n_heads, hd).transpose(0, 2, 1, 3)
    vh = v.reshape(B, L, n_heads, hd).transpose(0, 2, 1, 3)
    s = jnp.einsum("bhlk,bhmk->bhlm", qh, kh) / math.sqrt(hd)
    s = s + attn_mask.astype(jnp.float32).reshape(L, L)
    p = jax.nn.softmax(s, axis=-1)
    o = jnp.einsum("bhlm,bhmk->bhlk", p, vh)
    o = o.transpose(0, 2, 1, 3).reshape(B, L, D)
    return o @ params["wo"].T


if __name__ == "__main__":
    B, L, D, H = 2, 8, 32, 4

    key = jax.random.PRNGKey(0)
    keys = jax.random.split(key, 9)

    x = jax.random.normal(keys[0], (B, L, D), dtype=jnp.float32)
    params = {
        "wq": jax.random.normal(keys[1], (D, D), jnp.float32) * 0.05,
        "wk": jax.random.normal(keys[2], (D, D), jnp.float32) * 0.05,
        "wv": jax.random.normal(keys[3], (D, D), jnp.float32) * 0.05,
        "wo": jax.random.normal(keys[4], (D, D), jnp.float32) * 0.05,
        "q_gamma": 1.0 + 0.1 * jax.random.normal(keys[5], (D,), jnp.float32),
        "q_beta": 0.1 * jax.random.normal(keys[6], (D,), jnp.float32),
        "k_gamma": 1.0 + 0.1 * jax.random.normal(keys[7], (D,), jnp.float32),
        "k_beta": 0.1 * jax.random.normal(keys[8], (D,), jnp.float32),
    }

    # RoPE tables over the full model dim (matches apply_rotary_emb).
    half = D // 2
    inv_freq = 1.0 / (10000.0 ** (jnp.arange(0, half, dtype=jnp.float32) / half))
    t = jnp.arange(L, dtype=jnp.float32)
    freqs = jnp.outer(t, inv_freq)            # (L, D/2)
    freqs_cos = jnp.cos(freqs)
    freqs_sin = jnp.sin(freqs)

    # Causal additive mask, PyTorch-style (1, 1, L, L).
    causal = jnp.tril(jnp.ones((L, L), dtype=bool))
    attn_mask = jnp.where(causal, 0.0, -jnp.inf).astype(jnp.float32)
    attn_mask = attn_mask.reshape(1, 1, L, L)

    ref = _attention_reference(x, attn_mask, freqs_cos, freqs_sin, params, H)

    # bf16-at-the-MXU path (default; perf configuration for v6e/v7x).
    out = attention_forward(x, attn_mask, freqs_cos, freqs_sin, params, H)
    out = jax.block_until_ready(out)
    assert out.shape == (B, L, D)
    assert jnp.allclose(out, ref, atol=3e-2, rtol=3e-2), "bf16 path mismatch"

    # Full-f32 MXU path (exact up to the approximate softmax reciprocal).
    out_f32 = attention_forward(x, attn_mask, freqs_cos, freqs_sin, params, H,
                                mm_dtype=jnp.float32)
    out_f32 = jax.block_until_ready(out_f32)
    assert jnp.allclose(out_f32, ref, atol=5e-3, rtol=5e-3), "f32 path mismatch"

    print("KERNEL_OK")
</pallas_src>

<mosaic_0001>
module attributes {stable_mosaic.version = 11 : i64} {
  func.func @_attention_kernel(%arg0: i32, %arg1: memref<16x32xf32, #tpu.memory_space<vmem>>, %arg2: memref<32x96xbf16, #tpu.memory_space<vmem>>, %arg3: memref<32x32xbf16, #tpu.memory_space<vmem>>, %arg4: memref<32x32xf32, #tpu.memory_space<vmem>>, %arg5: memref<4x32x32xf32, #tpu.memory_space<vmem>>, %arg6: memref<64x32xf32, #tpu.memory_space<vmem>>, %arg7: memref<64x16xf32, #tpu.memory_space<vmem>>, %arg8: memref<16x32xf32, #tpu.memory_space<vmem>>) attributes {dimension_semantics = [#tpu.dimension_semantics<arbitrary>], iteration_bounds = array<i64: 1>, scalar_prefetch = 0 : i64, scratch_operands = 0 : i64, tpu.core_type = #tpu.core_type<tc>, window_params = [{pipeline_mode = #tpu.pipeline_mode<synchronous>, transform_indices = @transform_0, window_bounds = array<i64: 16, 32>}, {pipeline_mode = #tpu.pipeline_mode<synchronous>, transform_indices = @transform_1, window_bounds = array<i64: 32, 96>}, {pipeline_mode = #tpu.pipeline_mode<synchronous>, transform_indices = @transform_2, window_bounds = array<i64: 32, 32>}, {pipeline_mode = #tpu.pipeline_mode<synchronous>, transform_indices = @transform_3, window_bounds = array<i64: 32, 32>}, {pipeline_mode = #tpu.pipeline_mode<synchronous>, transform_indices = @transform_4, window_bounds = array<i64: 4, 32, 32>}, {pipeline_mode = #tpu.pipeline_mode<synchronous>, transform_indices = @transform_5, window_bounds = array<i64: 64, 32>}, {pipeline_mode = #tpu.pipeline_mode<synchronous>, transform_indices = @transform_6, window_bounds = array<i64: 64, 16>}, {pipeline_mode = #tpu.pipeline_mode<synchronous>, transform_indices = @transform_7, window_bounds = array<i64: 16, 32>}]} {
    %c0 = arith.constant 0 : index
    %c0_0 = arith.constant 0 : index
    %0 = vector.load %arg1[%c0, %c0_0] : memref<16x32xf32, #tpu.memory_space<vmem>>, vector<16x32xf32>
    %1 = arith.truncf %0 : vector<16x32xf32> to vector<16x32xbf16>
    %c0_1 = arith.constant 0 : index
    %c0_2 = arith.constant 0 : index
    %2 = vector.load %arg2[%c0_1, %c0_2] : memref<32x96xbf16, #tpu.memory_space<vmem>>, vector<32x96xbf16>
    %cst = arith.constant dense<0.000000e+00> : vector<16x96xf32>
    %3 = tpu.matmul %1, %2, %cst {dimension_numbers = #tpu.dot_dimension_numbers<[1], [0], [0], [1], [0, 0, 1, 1], [], []>} : vector<16x32xbf16>, vector<32x96xbf16>, vector<16x96xf32> -> vector<16x96xf32>
    %4 = vector.extract_strided_slice %3 {offsets = [0, 0], sizes = [16, 32], strides = [1, 1]} : vector<16x96xf32> to vector<16x32xf32>
    %5 = vector.extract_strided_slice %3 {offsets = [0, 32], sizes = [16, 32], strides = [1, 1]} : vector<16x96xf32> to vector<16x32xf32>
    %6 = vector.extract_strided_slice %3 {offsets = [0, 64], sizes = [16, 32], strides = [1, 1]} : vector<16x96xf32> to vector<16x32xf32>
    %7 = tpu.concatenate %4, %5 in 0 : vector<16x32xf32>, vector<16x32xf32> -> vector<32x32xf32>
    %c0_3 = arith.constant 0 : index
    %c0_4 = arith.constant 0 : index
    %c0_5 = arith.constant 0 : index
    %8 = vector.load %arg5[%c0_3, %c0_4, %c0_5] : memref<4x32x32xf32, #tpu.memory_space<vmem>>, vector<1x32x32xf32>
    %9 = vector.shape_cast %8 : vector<1x32x32xf32> to vector<32x32xf32>
    %c1 = arith.constant 1 : index
    %c0_6 = arith.constant 0 : index
    %c0_7 = arith.constant 0 : index
    %10 = vector.load %arg5[%c1, %c0_6, %c0_7] : memref<4x32x32xf32, #tpu.memory_space<vmem>>, vector<1x32x32xf32>
    %11 = vector.shape_cast %10 : vector<1x32x32xf32> to vector<32x32xf32>
    %c2 = arith.constant 2 : index
    %c0_8 = arith.constant 0 : index
    %c0_9 = arith.constant 0 : index
    %12 = vector.load %arg5[%c2, %c0_8, %c0_9] : memref<4x32x32xf32, #tpu.memory_space<vmem>>, vector<1x32x32xf32>
    %13 = vector.shape_cast %12 : vector<1x32x32xf32> to vector<32x32xf32>
    %c3 = arith.constant 3 : index
    %c0_10 = arith.constant 0 : index
    %c0_11 = arith.constant 0 : index
    %14 = vector.load %arg5[%c3, %c0_10, %c0_11] : memref<4x32x32xf32, #tpu.memory_space<vmem>>, vector<1x32x32xf32>
    %15 = vector.shape_cast %14 : vector<1x32x32xf32> to vector<32x32xf32>
    %cst_12 = arith.constant dense<0.000000e+00> : vector<32xf32>
    %16 = vector.multi_reduction <add>, %7, %cst_12 [1] : vector<32x32xf32> to vector<32xf32>
    %17 = vector.shape_cast %16 : vector<32xf32> to vector<32x1xf32>
    %cst_13 = arith.constant 3.200000e+01 : f32
    %18 = vector.broadcast %cst_13 : f32 to vector<32x1xf32>
    %19 = arith.divf %17, %18 : vector<32x1xf32>
    %20 = vector.broadcast %19 : vector<32x1xf32> to vector<32x32xf32>
    %21 = arith.subf %7, %20 : vector<32x32xf32>
    %22 = arith.mulf %21, %21 : vector<32x32xf32>
    %cst_14 = arith.constant dense<0.000000e+00> : vector<32xf32>
    %23 = vector.multi_reduction <add>, %22, %cst_14 [1] : vector<32x32xf32> to vector<32xf32>
    %24 = vector.shape_cast %23 : vector<32xf32> to vector<32x1xf32>
    %cst_15 = arith.constant 3.200000e+01 : f32
    %25 = vector.broadcast %cst_15 : f32 to vector<32x1xf32>
    %26 = arith.divf %24, %25 : vector<32x1xf32>
    %cst_16 = arith.constant 9.99999974E-6 : f32
    %27 = vector.broadcast %cst_16 : f32 to vector<32x1xf32>
    %28 = arith.addf %26, %27 : vector<32x1xf32>
    %29 = math.rsqrt %28 : vector<32x1xf32>
    %30 = vector.broadcast %29 : vector<32x1xf32> to vector<32x32xf32>
    %31 = arith.mulf %21, %30 : vector<32x32xf32>
    %32 = arith.mulf %31, %9 : vector<32x32xf32>
    %33 = arith.addf %32, %11 : vector<32x32xf32>
    %34 = arith.mulf %33, %13 : vector<32x32xf32>
    %c0_17 = arith.constant 0 : index
    %c0_18 = arith.constant 0 : index
    %35 = vector.load %arg4[%c0_17, %c0_18] : memref<32x32xf32, #tpu.memory_space<vmem>>, vector<32x32xf32>
    %cst_19 = arith.constant dense<0.000000e+00> : vector<32x32xf32>
    %36 = tpu.matmul %33, %35, %cst_19 {dimension_numbers = #tpu.dot_dimension_numbers<[1], [0], [0], [1], [0, 0, 1, 1], [], []>} : vector<32x32xf32>, vector<32x32xf32>, vector<32x32xf32> -> vector<32x32xf32>
    %37 = arith.mulf %36, %15 : vector<32x32xf32>
    %38 = arith.addf %34, %37 : vector<32x32xf32>
    %39 = vector.extract_strided_slice %38 {offsets = [0, 0], sizes = [16, 32], strides = [1, 1]} : vector<32x32xf32> to vector<16x32xf32>
    %40 = vector.extract_strided_slice %38 {offsets = [16, 0], sizes = [16, 32], strides = [1, 1]} : vector<32x32xf32> to vector<16x32xf32>
    %41 = vector.extract_strided_slice %39 {offsets = [0, 0], sizes = [8, 32], strides = [1, 1]} : vector<16x32xf32> to vector<8x32xf32>
    %42 = vector.extract_strided_slice %39 {offsets = [8, 0], sizes = [8, 32], strides = [1, 1]} : vector<16x32xf32> to vector<8x32xf32>
    %43 = tpu.concatenate %41, %41, %41, %41, %42, %42, %42, %42 in 0 : vector<8x32xf32>, vector<8x32xf32>, vector<8x32xf32>, vector<8x32xf32>, vector<8x32xf32>, vector<8x32xf32>, vector<8x32xf32>, vector<8x32xf32> -> vector<64x32xf32>
    %c0_20 = arith.constant 0 : index
    %c0_21 = arith.constant 0 : index
    %44 = vector.load %arg6[%c0_20, %c0_21] : memref<64x32xf32, #tpu.memory_space<vmem>>, vector<64x32xf32>
    %45 = arith.mulf %43, %44 : vector<64x32xf32>
    %46 = arith.truncf %45 : vector<64x32xf32> to vector<64x32xbf16>
    %47 = arith.truncf %40 : vector<16x32xf32> to vector<16x32xbf16>
    %cst_22 = arith.constant dense<0.000000e+00> : vector<64x16xf32>
    %48 = tpu.matmul %46, %47, %cst_22 {dimension_numbers = #tpu.dot_dimension_numbers<[1], [1], [0], [0], [0, 0, 1, 0], [], []>} : vector<64x32xbf16>, vector<16x32xbf16>, vector<64x16xf32> -> vector<64x16xf32>
    %c0_23 = arith.constant 0 : index
    %c0_24 = arith.constant 0 : index
    %49 = vector.load %arg7[%c0_23, %c0_24] : memref<64x16xf32, #tpu.memory_space<vmem>>, vector<64x16xf32>
    %50 = arith.addf %48, %49 : vector<64x16xf32>
    %cst_25 = arith.constant dense<0xFF800000> : vector<64xf32>
    %51 = vector.multi_reduction <maximumf>, %50, %cst_25 [1] : vector<64x16xf32> to vector<64xf32>
    %52 = vector.shape_cast %51 : vector<64xf32> to vector<64x1xf32>
    %53 = vector.broadcast %52 : vector<64x1xf32> to vector<64x16xf32>
    %54 = arith.subf %50, %53 : vector<64x16xf32>
    %55 = math.exp %54 : vector<64x16xf32>
    %cst_26 = arith.constant dense<0.000000e+00> : vector<64xf32>
    %56 = vector.multi_reduction <add>, %55, %cst_26 [1] : vector<64x16xf32> to vector<64xf32>
    %57 = vector.shape_cast %56 : vector<64xf32> to vector<64x1xf32>
    %58 = tpu.reciprocal %57 {approx = true} : vector<64x1xf32> -> vector<64x1xf32>
    %59 = vector.broadcast %58 : vector<64x1xf32> to vector<64x16xf32>
    %60 = arith.mulf %55, %59 : vector<64x16xf32>
    %61 = arith.truncf %60 : vector<64x16xf32> to vector<64x16xbf16>
    %62 = arith.truncf %6 : vector<16x32xf32> to vector<16x32xbf16>
    %cst_27 = arith.constant dense<0.000000e+00> : vector<64x32xf32>
    %63 = tpu.matmul %61, %62, %cst_27 {dimension_numbers = #tpu.dot_dimension_numbers<[1], [0], [0], [1], [0, 0, 1, 1], [], []>} : vector<64x16xbf16>, vector<16x32xbf16>, vector<64x32xf32> -> vector<64x32xf32>
    %c0_28 = arith.constant 0 : index
    %c0_29 = arith.constant 0 : index
    %64 = vector.load %arg6[%c0_28, %c0_29] : memref<64x32xf32, #tpu.memory_space<vmem>>, vector<64x32xf32>
    %65 = arith.mulf %63, %64 : vector<64x32xf32>
    %66 = vector.extract_strided_slice %65 {offsets = [0, 0], sizes = [8, 32], strides = [1, 1]} : vector<64x32xf32> to vector<8x32xf32>
    %67 = vector.extract_strided_slice %65 {offsets = [8, 0], sizes = [8, 32], strides = [1, 1]} : vector<64x32xf32> to vector<8x32xf32>
    %68 = arith.addf %66, %67 : vector<8x32xf32>
    %69 = vector.extract_strided_slice %65 {offsets = [16, 0], sizes = [8, 32], strides = [1, 1]} : vector<64x32xf32> to vector<8x32xf32>
    %70 = arith.addf %68, %69 : vector<8x32xf32>
    %71 = vector.extract_strided_slice %65 {offsets = [24, 0], sizes = [8, 32], strides = [1, 1]} : vector<64x32xf32> to vector<8x32xf32>
    %72 = arith.addf %70, %71 : vector<8x32xf32>
    %73 = vector.extract_strided_slice %65 {offsets = [32, 0], sizes = [8, 32], strides = [1, 1]} : vector<64x32xf32> to vector<8x32xf32>
    %74 = vector.extract_strided_slice %65 {offsets = [40, 0], sizes = [8, 32], strides = [1, 1]} : vector<64x32xf32> to vector<8x32xf32>
    %75 = arith.addf %73, %74 : vector<8x32xf32>
    %76 = vector.extract_strided_slice %65 {offsets = [48, 0], sizes = [8, 32], strides = [1, 1]} : vector<64x32xf32> to vector<8x32xf32>
    %77 = arith.addf %75, %76 : vector<8x32xf32>
    %78 = vector.extract_strided_slice %65 {offsets = [56, 0], sizes = [8, 32], strides = [1, 1]} : vector<64x32xf32> to vector<8x32xf32>
    %79 = arith.addf %77, %78 : vector<8x32xf32>
    %80 = tpu.concatenate %72, %79 in 0 : vector<8x32xf32>, vector<8x32xf32> -> vector<16x32xf32>
    %81 = arith.truncf %80 : vector<16x32xf32> to vector<16x32xbf16>
    %c0_30 = arith.constant 0 : index
    %c0_31 = arith.constant 0 : index
    %82 = vector.load %arg3[%c0_30, %c0_31] : memref<32x32xbf16, #tpu.memory_space<vmem>>, vector<32x32xbf16>
    %cst_32 = arith.constant dense<0.000000e+00> : vector<16x32xf32>
    %83 = tpu.matmul %81, %82, %cst_32 {dimension_numbers = #tpu.dot_dimension_numbers<[1], [0], [0], [1], [0, 0, 1, 1], [], []>} : vector<16x32xbf16>, vector<32x32xbf16>, vector<16x32xf32> -> vector<16x32xf32>
    %c0_33 = arith.constant 0 : index
    %c0_34 = arith.constant 0 : index
    %84 = vector.load %arg8[%c0_33, %c0_34] : memref<16x32xf32, #tpu.memory_space<vmem>>, vector<16x32xf32>
    tpu.vector_store %arg8[%c0_33, %c0_34], %83 {strides = array<i32>} : memref<16x32xf32, #tpu.memory_space<vmem>>, vector<16x32xf32>,
    return
  }
  func.func @transform_0(%arg0: i32) -> (i32, i32) {
    %c0_i32 = arith.constant 0 : i32
    %c0_i32_0 = arith.constant 0 : i32
    %c0_i32_1 = arith.constant 0 : i32
    return %c0_i32, %c0_i32_0 : i32, i32
  }
  func.func @transform_1(%arg0: i32) -> (i32, i32) {
    %c0_i32 = arith.constant 0 : i32
    %c0_i32_0 = arith.constant 0 : i32
    %c0_i32_1 = arith.constant 0 : i32
    return %c0_i32, %c0_i32_0 : i32, i32
  }
  func.func @transform_2(%arg0: i32) -> (i32, i32) {
    %c0_i32 = arith.constant 0 : i32
    %c0_i32_0 = arith.constant 0 : i32
    %c0_i32_1 = arith.constant 0 : i32
    return %c0_i32, %c0_i32_0 : i32, i32
  }
  func.func @transform_3(%arg0: i32) -> (i32, i32) {
    %c0_i32 = arith.constant 0 : i32
    %c0_i32_0 = arith.constant 0 : i32
    %c0_i32_1 = arith.constant 0 : i32
    return %c0_i32, %c0_i32_0 : i32, i32
  }
  func.func @transform_4(%arg0: i32) -> (i32, i32, i32) {
    %c0_i32 = arith.constant 0 : i32
    %c0_i32_0 = arith.constant 0 : i32
    %c0_i32_1 = arith.constant 0 : i32
    %c0_i32_2 = arith.constant 0 : i32
    return %c0_i32, %c0_i32_0, %c0_i32_1 : i32, i32, i32
  }
  func.func @transform_5(%arg0: i32) -> (i32, i32) {
    %c0_i32 = arith.constant 0 : i32
    %c0_i32_0 = arith.constant 0 : i32
    %c0_i32_1 = arith.constant 0 : i32
    return %c0_i32, %c0_i32_0 : i32, i32
  }
  func.func @transform_6(%arg0: i32) -> (i32, i32) {
    %c0_i32 = arith.constant 0 : i32
    %c0_i32_0 = arith.constant 0 : i32
    %c0_i32_1 = arith.constant 0 : i32
    return %c0_i32, %c0_i32_0 : i32, i32
  }
  func.func @transform_7(%arg0: i32) -> (i32, i32) {
    %c0_i32 = arith.constant 0 : i32
    %c0_i32_0 = arith.constant 0 : i32
    %c0_i32_1 = arith.constant 0 : i32
    return %c0_i32, %c0_i32_0 : i32, i32
  }
}

</mosaic_0001>

<llo_original>
// kernel: tpu_custom_call.1
$region0: #{tpu_custom_call.1}
  #allocation0 [shape = 'u32[]', space=smem, size = 0x4, offset = 0x4, fixed_abs, tag = 'smem constant byte address 0x4 - core index']
  #allocation1 [shape = 'u32[72,128]{1,0:T(1,128)}', space=vmem, size = 0x9000, scoped, tag = 'internal scratch']
  %s0 = inlined_call_operand.hbm [shape: f32[16,32], index: 0, kind: input, shape index: {}]
  %s1 = inlined_call_operand.hbm [shape: bf16[32,96], index: 1, kind: input, shape index: {}]
  %s2 = inlined_call_operand.hbm [shape: bf16[32,32], index: 2, kind: input, shape index: {}]
  %s3 = inlined_call_operand.vmem [shape: f32[32,32], index: 3, kind: input, shape index: {}]
  %s4 = inlined_call_operand.vmem [shape: f32[4,32,32], index: 4, kind: input, shape index: {}]
  %s5 = inlined_call_operand.vmem [shape: f32[64,32], index: 5, kind: input, shape index: {}]
  %s6 = inlined_call_operand.vmem [shape: f32[64,16], index: 6, kind: input, shape index: {}]
  %s7 = inlined_call_operand.hbm [shape: f32[16,32], index: 7, kind: output, shape index: {}]
  %s8 = sld [smem:[#allocation0]]
  $region50: #{tpu_custom_call.1} parent=0
    _
  %s10 = ssub.s32 1, %s8
  %s11 = scalar_select 0, %s10, %s8
  $region1: #{tpu_custom_call.1} parent=0
    #allocation2 [shape = 'u8[8192]{0}', space=vmem, size = 0x2000, scoped, tag = 'input window, operand 0, single buffered']
    #allocation3 [shape = 's32[1]{0}', space=sflag, size = 0x4, scoped, tag = 'scoped memory for tpu_custom_call.1']
    #allocation4 [shape = 's32[1]{0}', space=sflag, size = 0x4, scoped, tag = 'scoped memory for tpu_custom_call.1']
    #allocation5 [shape = 'u8[8192]{0}', space=vmem, size = 0x2000, scoped, tag = 'input window, operand 1, single buffered']
    #allocation6 [shape = 's32[1]{0}', space=sflag, size = 0x4, scoped, tag = 'scoped memory for tpu_custom_call.1']
    #allocation7 [shape = 'u8[8192]{0}', space=vmem, size = 0x2000, scoped, tag = 'input window, operand 2, single buffered']
    #allocation8 [shape = 'u8[8192]{0}', space=vmem, size = 0x2000, scoped, tag = 'output window, operand 0, single buffered']
    %12 = vsyncpa [#allocation3], 0
    %13 = vsyncpa [#allocation6], 0
    %14 = vsyncpa [#allocation4], 0
    // Predicated region
    $region2: #{tpu_custom_call.1} parent=1 // pred_check
      _
    $region3: #{tpu_custom_call.1} parent=1 // pred_check_branch
      %16 = sbr.rel (0) target = $region5
    $region4: #{tpu_custom_call.1} parent=1 // pred_region
      %18 = vsyncadd [#allocation3], 0
      %s19 = sshll.u32 %s0, 4
      %s20 = int_to_ptr.hbm [resolvable:$true] %s19
      %s21 = sshll.u32 [#allocation2], 4
      %s22 = int_to_ptr.vmem [resolvable:$true] %s21
      %27 = dma.hbm_to_vmem [thread:$0]  %s20, 256, %s22, [#allocation3], 128, 128, 8
    $region5: #{tpu_custom_call.1} parent=1 // pred_fallthru
      _
    // Predicated region
    $region6: #{tpu_custom_call.1} parent=1 // pred_check
      _
    $region7: #{tpu_custom_call.1} parent=1 // pred_check_branch
      %29 = sbr.rel (0) target = $region9
    $region8: #{tpu_custom_call.1} parent=1 // pred_region
      %31 = vsyncadd [#allocation6], 0
      %s32 = sshll.u32 %s1, 4
      %s33 = int_to_ptr.hbm [resolvable:$true] %s32
      %s34 = sshll.u32 [#allocation5], 4
      %s35 = int_to_ptr.vmem [resolvable:$true] %s34
      %40 = dma.hbm_to_vmem [thread:$0]  %s33, 256, %s35, [#allocation6], 64, 64, 4
    $region9: #{tpu_custom_call.1} parent=1 // pred_fallthru
      _
    // Predicated region
    $region10: #{tpu_custom_call.1} parent=1 // pred_check
      _
    $region11: #{tpu_custom_call.1} parent=1 // pred_check_branch
      %42 = sbr.rel (0) target = $region13
    $region12: #{tpu_custom_call.1} parent=1 // pred_region
      %44 = vsyncadd [#allocation6], 0
      %s45 = sshll.u32 %s2, 4
      %s46 = int_to_ptr.hbm [resolvable:$true] %s45
      %s47 = sshll.u32 [#allocation7], 4
      %s48 = int_to_ptr.vmem [resolvable:$true] %s47
      %53 = dma.hbm_to_vmem [thread:$0]  %s46, 256, %s48, [#allocation6], 64, 64, 4
    $region13: #{tpu_custom_call.1} parent=1 // pred_fallthru
      _
    // Predicated region
    $region14: #{tpu_custom_call.1} parent=1 // pred_check
      _
    $region15: #{tpu_custom_call.1} parent=1 // pred_check_branch
      %55 = sbr.rel (0) target = $region17
    $region16: #{tpu_custom_call.1} parent=1 // pred_region
      _
    $region17: #{tpu_custom_call.1} parent=1 // pred_fallthru
      _
    // Predicated region
    $region18: #{tpu_custom_call.1} parent=1 // pred_check
      _
    $region19: #{tpu_custom_call.1} parent=1 // pred_check_branch
      %57 = sbr.rel (0) target = $region21
    $region20: #{tpu_custom_call.1} parent=1 // pred_region
      _
    $region21: #{tpu_custom_call.1} parent=1 // pred_fallthru
      _
    // Predicated region
    $region22: #{tpu_custom_call.1} parent=1 // pred_check
      _
    $region23: #{tpu_custom_call.1} parent=1 // pred_check_branch
      %59 = sbr.rel (0) target = $region25
    $region24: #{tpu_custom_call.1} parent=1 // pred_region
      _
    $region25: #{tpu_custom_call.1} parent=1 // pred_fallthru
      _
    // Predicated region
    $region26: #{tpu_custom_call.1} parent=1 // pred_check
      _
    $region27: #{tpu_custom_call.1} parent=1 // pred_check_branch
      %61 = sbr.rel (0) target = $region29
    $region28: #{tpu_custom_call.1} parent=1 // pred_region
      _
    $region29: #{tpu_custom_call.1} parent=1 // pred_fallthru
      _
    // Predicated region
    $region30: #{tpu_custom_call.1} parent=1 // pred_check
      _
    $region31: #{tpu_custom_call.1} parent=1 // pred_check_branch
      %63 = sbr.rel (0) target = $region33
    $region32: #{tpu_custom_call.1} parent=1 // pred_region
      %65 = dma.done [#allocation3], 256
    $region33: #{tpu_custom_call.1} parent=1 // pred_fallthru
      _
    // Predicated region
    $region34: #{tpu_custom_call.1} parent=1 // pred_check
      _
    $region35: #{tpu_custom_call.1} parent=1 // pred_check_branch
      %67 = sbr.rel (0) target = $region37
    $region36: #{tpu_custom_call.1} parent=1 // pred_region
      %69 = dma.done [#allocation6], 256
    $region37: #{tpu_custom_call.1} parent=1 // pred_fallthru
      _
    // Predicated region
    $region38: #{tpu_custom_call.1} parent=1 // pred_check
      _
    $region39: #{tpu_custom_call.1} parent=1 // pred_check_branch
      %71 = sbr.rel (0) target = $region41
    $region40: #{tpu_custom_call.1} parent=1 // pred_region
      %73 = dma.done [#allocation6], 256
    $region41: #{tpu_custom_call.1} parent=1 // pred_fallthru
      _
    %v75 = vld [vmem:[#allocation2] sm:$0xff]
    %v76 = vld [vmem:[#allocation2 + $0x8] sm:$0xff]
    %v77 = vpack.c.bf16 %v76, %v75
    %v78 = vld [vmem:[#allocation5] sm:$0xf]
    %v79 = vld [vmem:[#allocation5 + $0x4] sm:$0xf]
    %v80 = vld [vmem:[#allocation5 + $0x8] sm:$0xf]
    %v81 = vld [vmem:[#allocation5 + $0xc] sm:$0xf]
    %v86 = vunpack.c.l.b16 %v78
    %v87 = vunpack.c.l.b16 %v79
    %v88 = vunpack.c.l.b16 %v80
    %v89 = vunpack.c.l.b16 %v81
    %v90 = vpack.c.b16 %v87, %v86
    %v91 = vpack.c.b16 %v89, %v88
    %vm94 = vcmask 261120
    %v96 = vsel %vm94, %v77, 0
    %98 = vmatpush.bf16.msra.mxu0 0
    %99 = vmatpush.bf16.msra.mxu0 0
    %100 = vmatpush.bf16.msra.mxu0 0
    %101 = vmatpush.bf16.msra.mxu0 0
    %102 = vmatpush.bf16.msra.mxu0 0
    %103 = vmatpush.bf16.msra.mxu0 0
    %104 = vmatpush.bf16.msra.mxu0 %v91
    %105 = vmatpush.bf16.msra.mxu0 %v90
    %106 = vmatmul.bf16.gmra.mxu0 %v96
    %v107 = vpop.f32.mrf.mxu0
    %v108 = vadd.f32 0.0, %v107
    %v109 = vpop.f32.mrf.mxu0
    %v110 = vadd.f32 0.0, %v109
    %111 = vdwg.mxu0
    %114 = vrot.lane.b32.xlu0 %v108, 96
    %v115 = vpop.permute.xlu0 %114
    %116 = vrot.lane.b32.xlu0 %v110, 96
    %v117 = vpop.permute.xlu0 %116
    %v120 = vld [vmem:[%s4] sm:$0xff]
    %v121 = vld [vmem:[%s4 + $0x8] sm:$0xff]
    %v122 = vld [vmem:[%s4 + $0x10] sm:$0xff]
    %v123 = vld [vmem:[%s4 + $0x18] sm:$0xff]
    %s124 = scalar_lea.vmem %s4, 32
    %v125 = vld [vmem:[%s124] sm:$0xff]
    %v126 = vld [vmem:[%s124 + $0x8] sm:$0xff]
    %v127 = vld [vmem:[%s124 + $0x10] sm:$0xff]
    %v128 = vld [vmem:[%s124 + $0x18] sm:$0xff]
    %s129 = scalar_lea.vmem %s4, 64
    %v130 = vld [vmem:[%s129] sm:$0xff]
    %v131 = vld [vmem:[%s129 + $0x8] sm:$0xff]
    %v132 = vld [vmem:[%s129 + $0x10] sm:$0xff]
    %v133 = vld [vmem:[%s129 + $0x18] sm:$0xff]
    %s134 = scalar_lea.vmem %s4, 96
    %v135 = vld [vmem:[%s134] sm:$0xff]
    %v136 = vld [vmem:[%s134 + $0x8] sm:$0xff]
    %v137 = vld [vmem:[%s134 + $0x10] sm:$0xff]
    %v138 = vld [vmem:[%s134 + $0x18] sm:$0xff]
    %v139 = vsel %vm94, %v108, 0.0
    %140 = vadd.xlane.f32.xlu0 %v139
    %v141 = vpop.xlane.xlu0 %140
    %v142 = vsel %vm94, %v110, 0.0
    %143 = vadd.xlane.f32.xlu0 %v142
    %v144 = vpop.xlane.xlu0 %143
    %v145 = vsel %vm94, %v115, 0.0
    %146 = vadd.xlane.f32.xlu0 %v145
    %v147 = vpop.xlane.xlu0 %146
    %v148 = vsel %vm94, %v117, 0.0
    %149 = vadd.xlane.f32.xlu0 %v148
    %v150 = vpop.xlane.xlu0 %149
    %v151 = vrcp.pop 32.0
    %v152 = vmul.f32 32.0, %v151
    %v153 = vsub.f32 1.0, %v152
    %v154 = vmul.f32 %v151, %v153
    %v155 = vadd.f32 %v151, %v154
    %vm156 = vweird.f32 %v151
    %v157 = vsel %vm156, %v151, %v155
    %v158 = vmul.f32 %v141, %v157
    %v159 = vmul.f32 %v144, %v157
    %v160 = vmul.f32 %v147, %v157
    %v161 = vmul.f32 %v150, %v157
    %v162 = vsub.f32 %v108, %v158
    %v163 = vsub.f32 %v110, %v159
    %v164 = vsub.f32 %v115, %v160
    %v165 = vsub.f32 %v117, %v161
    %v166 = vmul.f32 %v162, %v162
    %v167 = vmul.f32 %v163, %v163
    %v168 = vmul.f32 %v164, %v164
    %v169 = vmul.f32 %v165, %v165
    %v170 = vsel %vm94, %v166, 0.0
    %171 = vadd.xlane.f32.xlu0 %v170
    %v172 = vpop.xlane.xlu0 %171
    %v173 = vsel %vm94, %v167, 0.0
    %174 = vadd.xlane.f32.xlu0 %v173
    %v175 = vpop.xlane.xlu0 %174
    %v176 = vsel %vm94, %v168, 0.0
    %177 = vadd.xlane.f32.xlu0 %v176
    %v178 = vpop.xlane.xlu0 %177
    %v179 = vsel %vm94, %v169, 0.0
    %180 = vadd.xlane.f32.xlu0 %v179
    %v181 = vpop.xlane.xlu0 %180
    %v182 = vmul.f32 %v172, %v157
    %v183 = vmul.f32 %v175, %v157
    %v184 = vmul.f32 %v178, %v157
    %v185 = vmul.f32 %v181, %v157
    %v186 = vadd.f32 %v182, 1e-05
    %v187 = vadd.f32 %v183, 1e-05
    %v188 = vadd.f32 %v184, 1e-05
    %v189 = vadd.f32 %v185, 1e-05
    %v190 = vrsqrt.pop %v186
    %v191 = vmul.f32 %v190, %v186
    %v192 = vmul.f32 %v191, %v190
    %v193 = vmul.f32 0.5, %v192
    %v194 = vsub.f32 1.5, %v193
    %v195 = vmul.f32 %v190, %v194
    %vm196 = vweird.f32 %v186
    %vm197 = vweird.f32 %v190
    %vm198 = vmor %vm196, %vm197
    %v199 = vsel %vm198, %v190, %v195
    %v200 = vrsqrt.pop %v187
    %v201 = vmul.f32 %v200, %v187
    %v202 = vmul.f32 %v201, %v200
    %v203 = vmul.f32 0.5, %v202
    %v204 = vsub.f32 1.5, %v203
    %v205 = vmul.f32 %v200, %v204
    %vm206 = vweird.f32 %v187
    %vm207 = vweird.f32 %v200
    %vm208 = vmor %vm206, %vm207
    %v209 = vsel %vm208, %v200, %v205
    %v210 = vrsqrt.pop %v188
    %v211 = vmul.f32 %v210, %v188
    %v212 = vmul.f32 %v211, %v210
    %v213 = vmul.f32 0.5, %v212
    %v214 = vsub.f32 1.5, %v213
    %v215 = vmul.f32 %v210, %v214
    %vm216 = vweird.f32 %v188
    %vm217 = vweird.f32 %v210
    %vm218 = vmor %vm216, %vm217
    %v219 = vsel %vm218, %v210, %v215
    %v220 = vrsqrt.pop %v189
    %v221 = vmul.f32 %v220, %v189
    %v222 = vmul.f32 %v221, %v220
    %v223 = vmul.f32 0.5, %v222
    %v224 = vsub.f32 1.5, %v223
    %v225 = vmul.f32 %v220, %v224
    %vm226 = vweird.f32 %v189
    %vm227 = vweird.f32 %v220
    %vm228 = vmor %vm226, %vm227
    %v229 = vsel %vm228, %v220, %v225
    %v230 = vmul.f32 %v162, %v199
    %v231 = vmul.f32 %v163, %v209
    %v232 = vmul.f32 %v164, %v219
    %v233 = vmul.f32 %v165, %v229
    %v234 = vmul.f32 %v230, %v120
    %v235 = vmul.f32 %v231, %v121
    %v236 = vmul.f32 %v232, %v122
    %v237 = vmul.f32 %v233, %v123
    %v238 = vadd.f32 %v234, %v125
    %v239 = vadd.f32 %v235, %v126
    %v240 = vadd.f32 %v236, %v127
    %v241 = vadd.f32 %v237, %v128
    %v242 = vmul.f32 %v238, %v130
    %v243 = vmul.f32 %v239, %v131
    %v244 = vmul.f32 %v240, %v132
    %v245 = vmul.f32 %v241, %v133
    %v246 = vld [vmem:[%s3] sm:$0xff]
    %v247 = vld [vmem:[%s3 + $0x8] sm:$0xff]
    %v248 = vld [vmem:[%s3 + $0x10] sm:$0xff]
    %v249 = vld [vmem:[%s3 + $0x18] sm:$0xff]
    %v251 = vsel %vm94, %v238, 0
    %v254 = vsel %vm94, %v239, 0
    %v257 = vsel %vm94, %v240, 0
    %v260 = vsel %vm94, %v241, 0
    %262 = vmatpush.msra.mxu0 0.0
    %263 = vmatpush.msra.mxu0 0.0
    %264 = vmatpush.msra.mxu0 0.0
    %265 = vmatpush.msra.mxu0 0.0
    %266 = vmatpush.msra.mxu0 0.0
    %267 = vmatpush.msra.mxu0 0.0
    %268 = vmatpush.msra.mxu0 0.0
    %269 = vmatpush.msra.mxu0 0.0
    %270 = vmatpush.msra.mxu0 0.0
    %271 = vmatpush.msra.mxu0 0.0
    %272 = vmatpush.msra.mxu0 0.0
    %273 = vmatpush.msra.mxu0 0.0
    %274 = vmatpush.msra.mxu0 %v249
    %275 = vmatpush.msra.mxu0 %v248
    %276 = vmatpush.msra.mxu0 %v247
    %277 = vmatpush.msra.mxu0 %v246
    %278 = vmatmul.f32.gmra.mxu0 %v251
    %v279 = vpop.f32.mrf.mxu0
    %v280 = vadd.f32 0.0, %v279
    %281 = vmatmul.f32.gmra.mxu0 %v254
    %v282 = vpop.f32.mrf.mxu0
    %v283 = vadd.f32 0.0, %v282
    %284 = vmatmul.f32.gmra.mxu0 %v257
    %v285 = vpop.f32.mrf.mxu0
    %v286 = vadd.f32 0.0, %v285
    %287 = vmatmul.f32.gmra.mxu0 %v260
    %v288 = vpop.f32.mrf.mxu0
    %v289 = vadd.f32 0.0, %v288
    %290 = vdwg.mxu0
    %v291 = vmul.f32 %v280, %v135
    %v292 = vmul.f32 %v283, %v136
    %v293 = vmul.f32 %v286, %v137
    %v294 = vmul.f32 %v289, %v138
    %v295 = vadd.f32 %v242, %v291
    %v296 = vadd.f32 %v243, %v292
    %v297 = vadd.f32 %v244, %v293
    %v298 = vadd.f32 %v245, %v294
    %v299 = vld [vmem:[%s5] sm:$0xff]
    %v300 = vld [vmem:[%s5 + $0x8] sm:$0xff]
    %v301 = vld [vmem:[%s5 + $0x10] sm:$0xff]
    %v302 = vld [vmem:[%s5 + $0x18] sm:$0xff]
    %v303 = vld [vmem:[%s5 + $0x20] sm:$0xff]
    %v304 = vld [vmem:[%s5 + $0x28] sm:$0xff]
    %v305 = vld [vmem:[%s5 + $0x30] sm:$0xff]
    %v306 = vld [vmem:[%s5 + $0x38] sm:$0xff]
    %v307 = vmul.f32 %v295, %v299
    %v308 = vmul.f32 %v295, %v300
    %v309 = vmul.f32 %v295, %v301
    %v310 = vmul.f32 %v295, %v302
    %v311 = vmul.f32 %v296, %v303
    %v312 = vmul.f32 %v296, %v304
    %v313 = vmul.f32 %v296, %v305
    %v314 = vmul.f32 %v296, %v306
    %v315 = vpack.c.bf16 %v308, %v307
    %v316 = vpack.c.bf16 %v310, %v309
    %v317 = vpack.c.bf16 %v312, %v311
    %v318 = vpack.c.bf16 %v314, %v313
    %v319 = vpack.c.bf16 %v298, %v297
    %v320 = vld [vmem:[%s6] sm:$0xff]
    %v321 = vld [vmem:[%s6 + $0x8] sm:$0xff]
    %v322 = vld [vmem:[%s6 + $0x10] sm:$0xff]
    %v323 = vld [vmem:[%s6 + $0x18] sm:$0xff]
    %v324 = vld [vmem:[%s6 + $0x20] sm:$0xff]
    %v325 = vld [vmem:[%s6 + $0x28] sm:$0xff]
    %v326 = vld [vmem:[%s6 + $0x30] sm:$0xff]
    %v327 = vld [vmem:[%s6 + $0x38] sm:$0xff]
    %v329 = vsel %vm94, %v315, 0
    %v332 = vsel %vm94, %v316, 0
    %v335 = vsel %vm94, %v317, 0
    %v338 = vsel %vm94, %v318, 0
    %v341 = vsel %vm94, %v319, 0
    %343 = vmatpush.bf16.xpose.msra.mxu0 0
    %344 = vmatpush.bf16.xpose.msra.mxu0 0
    %345 = vmatpush.bf16.xpose.msra.mxu0 0
    %346 = vmatpush.bf16.xpose.msra.mxu0 0
    %347 = vmatpush.bf16.xpose.msra.mxu0 0
    %348 = vmatpush.bf16.xpose.msra.mxu0 0
    %349 = vmatpush.bf16.xpose.msra.mxu0 0
    %350 = vmatpush.bf16.xpose.msra.mxu0 %v341
    %351 = vmatmul.bf16.gmra.mxu0 %v329
    %v352 = vpop.f32.mrf.mxu0
    %v353 = vadd.f32 %v320, %v352
    %v354 = vpop.f32.mrf.mxu0
    %v355 = vadd.f32 %v321, %v354
    %356 = vmatmul.bf16.gmra.mxu0 %v332
    %v357 = vpop.f32.mrf.mxu0
    %v358 = vadd.f32 %v322, %v357
    %v359 = vpop.f32.mrf.mxu0
    %v360 = vadd.f32 %v323, %v359
    %361 = vmatmul.bf16.gmra.mxu0 %v335
    %v362 = vpop.f32.mrf.mxu0
    %v363 = vadd.f32 %v324, %v362
    %v364 = vpop.f32.mrf.mxu0
    %v365 = vadd.f32 %v325, %v364
    %366 = vmatmul.bf16.gmra.mxu0 %v338
    %v367 = vpop.f32.mrf.mxu0
    %v368 = vadd.f32 %v326, %v367
    %v369 = vpop.f32.mrf.mxu0
    %v370 = vadd.f32 %v327, %v369
    %371 = vdwg.mxu0
    %vm372 = vcmask 130048
    %v373 = vsel %vm372, %v353, -inf
    %374 = vmax.xlane.f32.xlu0 %v373
    %v375 = vpop.xlane.xlu0 %374
    %v376 = vsel %vm372, %v355, -inf
    %377 = vmax.xlane.f32.xlu0 %v376
    %v378 = vpop.xlane.xlu0 %377
    %v379 = vsel %vm372, %v358, -inf
    %380 = vmax.xlane.f32.xlu0 %v379
    %v381 = vpop.xlane.xlu0 %380
    %v382 = vsel %vm372, %v360, -inf
    %383 = vmax.xlane.f32.xlu0 %v382
    %v384 = vpop.xlane.xlu0 %383
    %v385 = vsel %vm372, %v363, -inf
    %386 = vmax.xlane.f32.xlu0 %v385
    %v387 = vpop.xlane.xlu0 %386
    %v388 = vsel %vm372, %v365, -inf
    %389 = vmax.xlane.f32.xlu0 %v388
    %v390 = vpop.xlane.xlu0 %389
    %v391 = vsel %vm372, %v368, -inf
    %392 = vmax.xlane.f32.xlu0 %v391
    %v393 = vpop.xlane.xlu0 %392
    %v394 = vsel %vm372, %v370, -inf
    %395 = vmax.xlane.f32.xlu0 %v394
    %v396 = vpop.xlane.xlu0 %395
    %v397 = vsub.f32 %v353, %v375
    %v398 = vsub.f32 %v355, %v378
    %v399 = vsub.f32 %v358, %v381
    %v400 = vsub.f32 %v360, %v384
    %v401 = vsub.f32 %v363, %v387
    %v402 = vsub.f32 %v365, %v390
    %v403 = vsub.f32 %v368, %v393
    %v404 = vsub.f32 %v370, %v396
    %v405 = vmul.f32 %v397, 1.442695
    %v406 = vpow.pop %v405
    %v407 = vmul.f32 %v398, 1.442695
    %v408 = vpow.pop %v407
    %v409 = vmul.f32 %v399, 1.442695
    %v410 = vpow.pop %v409
    %v411 = vmul.f32 %v400, 1.442695
    %v412 = vpow.pop %v411
    %v413 = vmul.f32 %v401, 1.442695
    %v414 = vpow.pop %v413
    %v415 = vmul.f32 %v402, 1.442695
    %v416 = vpow.pop %v415
    %v417 = vmul.f32 %v403, 1.442695
    %v418 = vpow.pop %v417
    %v419 = vmul.f32 %v404, 1.442695
    %v420 = vpow.pop %v419
    %v421 = vsel %vm372, %v406, 0.0
    %422 = vadd.xlane.f32.xlu0 %v421
    %v423 = vpop.xlane.xlu0 %422
    %v424 = vsel %vm372, %v408, 0.0
    %425 = vadd.xlane.f32.xlu0 %v424
    %v426 = vpop.xlane.xlu0 %425
    %v427 = vsel %vm372, %v410, 0.0
    %428 = vadd.xlane.f32.xlu0 %v427
    %v429 = vpop.xlane.xlu0 %428
    %v430 = vsel %vm372, %v412, 0.0
    %431 = vadd.xlane.f32.xlu0 %v430
    %v432 = vpop.xlane.xlu0 %431
    %v433 = vsel %vm372, %v414, 0.0
    %434 = vadd.xlane.f32.xlu0 %v433
    %v435 = vpop.xlane.xlu0 %434
    %v436 = vsel %vm372, %v416, 0.0
    %437 = vadd.xlane.f32.xlu0 %v436
    %v438 = vpop.xlane.xlu0 %437
    %v439 = vsel %vm372, %v418, 0.0
    %440 = vadd.xlane.f32.xlu0 %v439
    %v441 = vpop.xlane.xlu0 %440
    %v442 = vsel %vm372, %v420, 0.0
    %443 = vadd.xlane.f32.xlu0 %v442
    %v444 = vpop.xlane.xlu0 %443
    %v445 = vrcp.pop %v423
    %v446 = vrcp.pop %v426
    %v447 = vrcp.pop %v429
    %v448 = vrcp.pop %v432
    %v449 = vrcp.pop %v435
    %v450 = vrcp.pop %v438
    %v451 = vrcp.pop %v441
    %v452 = vrcp.pop %v444
    %v453 = vmul.f32 %v406, %v445
    %v454 = vmul.f32 %v408, %v446
    %v455 = vmul.f32 %v410, %v447
    %v456 = vmul.f32 %v412, %v448
    %v457 = vmul.f32 %v414, %v449
    %v458 = vmul.f32 %v416, %v450
    %v459 = vmul.f32 %v418, %v451
    %v460 = vmul.f32 %v420, %v452
    %v461 = vpack.c.bf16 %v454, %v453
    %v462 = vpack.c.bf16 %v456, %v455
    %v463 = vpack.c.bf16 %v458, %v457
    %v464 = vpack.c.bf16 %v460, %v459
    %v465 = vpack.c.bf16 %v110, %v108
    %467 = vrot.lane.b32.xlu0 %v465, 64
    %v468 = vpop.permute.xlu0 %467
    %v471 = vsel %vm372, %v461, 0
    %v474 = vsel %vm372, %v462, 0
    %v477 = vsel %vm372, %v463, 0
    %v480 = vsel %vm372, %v464, 0
    %482 = vmatpush.bf16.msra.mxu0 0
    %483 = vmatpush.bf16.msra.mxu0 0
    %484 = vmatpush.bf16.msra.mxu0 0
    %485 = vmatpush.bf16.msra.mxu0 0
    %486 = vmatpush.bf16.msra.mxu0 0
    %487 = vmatpush.bf16.msra.mxu0 0
    %488 = vmatpush.bf16.msra.mxu0 0
    %489 = vmatpush.bf16.msra.mxu0 %v468
    %490 = vmatmul.bf16.gmra.mxu0 %v471
    %v491 = vpop.f32.mrf.mxu0
    %v492 = vadd.f32 0.0, %v491
    %v493 = vpop.f32.mrf.mxu0
    %v494 = vadd.f32 0.0, %v493
    %495 = vmatmul.bf16.gmra.mxu0 %v474
    %v496 = vpop.f32.mrf.mxu0
    %v497 = vadd.f32 0.0, %v496
    %v498 = vpop.f32.mrf.mxu0
    %v499 = vadd.f32 0.0, %v498
    %500 = vmatmul.bf16.gmra.mxu0 %v477
    %v501 = vpop.f32.mrf.mxu0
    %v502 = vadd.f32 0.0, %v501
    %v503 = vpop.f32.mrf.mxu0
    %v504 = vadd.f32 0.0, %v503
    %505 = vmatmul.bf16.gmra.mxu0 %v480
    %v506 = vpop.f32.mrf.mxu0
    %v507 = vadd.f32 0.0, %v506
    %v508 = vpop.f32.mrf.mxu0
    %v509 = vadd.f32 0.0, %v508
    %510 = vdwg.mxu0
    %v511 = vmul.f32 %v492, %v299
    %v512 = vmul.f32 %v494, %v300
    %v513 = vmul.f32 %v497, %v301
    %v514 = vmul.f32 %v499, %v302
    %v515 = vmul.f32 %v502, %v303
    %v516 = vmul.f32 %v504, %v304
    %v517 = vmul.f32 %v507, %v305
    %v518 = vmul.f32 %v509, %v306
    %v519 = vadd.f32 %v511, %v512
    %v520 = vadd.f32 %v519, %v513
    %v521 = vadd.f32 %v520, %v514
    %v522 = vadd.f32 %v515, %v516
    %v523 = vadd.f32 %v522, %v517
    %v524 = vadd.f32 %v523, %v518
    %v525 = vpack.c.bf16 %v524, %v521
    %v526 = vld [vmem:[#allocation7] sm:$0xf]
    %v527 = vld [vmem:[#allocation7 + $0x4] sm:$0xf]
    %v528 = vld [vmem:[#allocation7 + $0x8] sm:$0xf]
    %v529 = vld [vmem:[#allocation7 + $0xc] sm:$0xf]
    %v534 = vunpack.c.l.b16 %v526
    %v535 = vunpack.c.l.b16 %v527
    %v536 = vunpack.c.l.b16 %v528
    %v537 = vunpack.c.l.b16 %v529
    %v538 = vpack.c.b16 %v535, %v534
    %v539 = vpack.c.b16 %v537, %v536
    %v543 = vsel %vm94, %v525, 0
    %545 = vmatpush.bf16.msra.mxu0 0
    %546 = vmatpush.bf16.msra.mxu0 0
    %547 = vmatpush.bf16.msra.mxu0 0
    %548 = vmatpush.bf16.msra.mxu0 0
    %549 = vmatpush.bf16.msra.mxu0 0
    %550 = vmatpush.bf16.msra.mxu0 0
    %551 = vmatpush.bf16.msra.mxu0 %v539
    %552 = vmatpush.bf16.msra.mxu0 %v538
    %553 = vmatmul.bf16.gmra.mxu0 %v543
    %v554 = vpop.f32.mrf.mxu0
    %v555 = vadd.f32 0.0, %v554
    %v556 = vpop.f32.mrf.mxu0
    %v557 = vadd.f32 0.0, %v556
    %558 = vdwg.mxu0
    %559 = vst.msk [vmem:[#allocation8] sm:$0xff] %vm94, %v555
    %560 = vst.msk [vmem:[#allocation8 + $0x8] sm:$0xff] %vm94, %v557
    // Predicated region
    $region42: #{tpu_custom_call.1} parent=1 // pred_check
      _
    $region43: #{tpu_custom_call.1} parent=1 // pred_check_branch
      %562 = sbr.rel (0) target = $region45
    $region44: #{tpu_custom_call.1} parent=1 // pred_region
      %564 = vsyncadd [#allocation4], 0
      %s565 = sshll.u32 [#allocation8], 4
      %s566 = int_to_ptr.vmem [resolvable:$true] %s565
      %s567 = sshll.u32 %s7, 4
      %s568 = int_to_ptr.hbm [resolvable:$true] %s567
      %573 = dma.vmem_to_hbm [thread:$0]  %s566, 256, %s568, [#allocation4], 128, 128, 8
    $region45: #{tpu_custom_call.1} parent=1 // pred_fallthru
      _
    // Predicated region
    $region46: #{tpu_custom_call.1} parent=1 // pred_check
      _
    $region47: #{tpu_custom_call.1} parent=1 // pred_check_branch
      %575 = sbr.rel (0) target = $region49
    $region48: #{tpu_custom_call.1} parent=1 // pred_region
      %577 = dma.done [#allocation4], 256
    $region49: #{tpu_custom_call.1} parent=1 // pred_fallthru
      _
    %578 = vsyncpa [#allocation3], 1
    %579 = vsyncpa [#allocation6], 1
    %580 = vsyncpa [#allocation4], 1

</llo_original>
